<compile_context>
chip_gen: v7x
topology: tpu7x:2x2x1
jax: 0.10.0
libtpu: 0.0.40
codegen_flags: <defaults>
</compile_context>

<pallas_src>
import functools

import jax
import jax.numpy as jnp
from jax import lax
from jax.experimental import pallas as pl
from jax.experimental.pallas import tpu as pltpu


# ---------------------------------------------------------------------------
# Single-pass kernel: one (Bt, C, HW) slab of x1/x2 per grid step.
# ---------------------------------------------------------------------------
def sefa_fused_kernel(x1_ref, x2_ref, w1a_ref, w1b_ref, b1_ref,
                      w2f_ref, b2f_ref, out_ref, *, inv_hw, C):
    # Global average pool over the spatial axis, f32 accumulate.  Read the
    # refs directly (short live ranges; re-read again for the combine below).
    p1 = jnp.sum(x1_ref[...].astype(jnp.float32), axis=-1) * inv_hw   # [Bt, C]
    p2 = jnp.sum(x2_ref[...].astype(jnp.float32), axis=-1) * inv_hw   # [Bt, C]

    # fc1 on cat([p1, p2]): weight pre-split so no in-kernel concat.
    h = jnp.maximum(
        jnp.dot(p1, w1a_ref[...], preferred_element_type=jnp.float32)
        + jnp.dot(p2, w1b_ref[...], preferred_element_type=jnp.float32)
        + b1_ref[...], 0.0)                                            # [Bt, hidden]

    # fc2 fused into one matmul; even output columns first, odd second.
    logits = jnp.dot(h, w2f_ref[...], preferred_element_type=jnp.float32) + b2f_ref[...]
    a = logits[:, :C]          # logits for the x1 gate
    b = logits[:, C:]          # logits for the x2 gate

    # Softmax over the per-channel pair (a, b), exact divide for parity.
    m = jnp.maximum(a, b)
    ea = jnp.exp(a - m)
    eb = jnp.exp(b - m)
    inv = 1.0 / (ea + eb)
    g1 = (ea * inv).astype(out_ref.dtype)[:, :, None]                  # [Bt, C, 1]
    g2 = (eb * inv).astype(out_ref.dtype)[:, :, None]

    # Broadcasted combine in the streamed dtype.
    out_ref[...] = (x1_ref[...].astype(out_ref.dtype) * g1
                    + x2_ref[...].astype(out_ref.dtype) * g2)


# ---------------------------------------------------------------------------
# Two-pass fallback, pass 1: HW-tiled pooled reduction + gate MLP + softmax.
# Grid (B, n_hw_tiles), HW is the (arbitrary) reduction axis.
# ---------------------------------------------------------------------------
def sefa_gate_kernel(x1_ref, x2_ref, w1a_ref, w1b_ref, b1_ref, w2f_ref, b2f_ref,
                     g1_ref, g2_ref, p1_acc, p2_acc, *, inv_hw, hw, hw_tile, C):
    t = pl.program_id(1)

    @pl.when(t == 0)
    def _():
        p1_acc[...] = jnp.zeros_like(p1_acc)
        p2_acc[...] = jnp.zeros_like(p2_acc)

    # Mask out-of-range lanes on the (possibly partial) last spatial tile so
    # undefined padded reads never pollute the pooled sum.
    lane = lax.broadcasted_iota(jnp.int32, (1, C, hw_tile), 2) + t * hw_tile
    mask = lane < hw
    p1_acc[...] += jnp.sum(jnp.where(mask, x1_ref[...].astype(jnp.float32), 0.0), axis=-1)
    p2_acc[...] += jnp.sum(jnp.where(mask, x2_ref[...].astype(jnp.float32), 0.0), axis=-1)

    @pl.when(t == pl.num_programs(1) - 1)
    def _():
        p1 = p1_acc[...] * inv_hw                                      # [1, C]
        p2 = p2_acc[...] * inv_hw
        h = jnp.maximum(
            jnp.dot(p1, w1a_ref[...], preferred_element_type=jnp.float32)
            + jnp.dot(p2, w1b_ref[...], preferred_element_type=jnp.float32)
            + b1_ref[...], 0.0)
        logits = jnp.dot(h, w2f_ref[...], preferred_element_type=jnp.float32) + b2f_ref[...]
        a = logits[:, :C]
        b = logits[:, C:]
        m = jnp.maximum(a, b)
        ea = jnp.exp(a - m)
        eb = jnp.exp(b - m)
        inv = 1.0 / (ea + eb)
        # Store gates with the channel axis on sublanes (shape [1, C, 1]) so
        # the combine kernel's broadcast against (C, HW-tile) is layout-native.
        g1_ref[...] = (ea * inv)[:, :, None]
        g2_ref[...] = (eb * inv)[:, :, None]


# ---------------------------------------------------------------------------
# Two-pass fallback, pass 2: (B, HW-tile)-gridded broadcasted combine.
# ---------------------------------------------------------------------------
def sefa_combine_kernel(x1_ref, x2_ref, g1_ref, g2_ref, out_ref):
    g1 = g1_ref[...].astype(out_ref.dtype)      # [1, C, 1], channel on sublanes
    g2 = g2_ref[...].astype(out_ref.dtype)
    out_ref[...] = (x1_ref[...].astype(out_ref.dtype) * g1
                    + x2_ref[...].astype(out_ref.dtype) * g2)


# ---------------------------------------------------------------------------
# Parameters
# ---------------------------------------------------------------------------
def init_sefa_params(key, inplanes, r=4):
    """PyTorch-layout parameters (Linear weight = [out_features, in_features])."""
    hidden = int(2 * inplanes / r)
    k1, k2, k3, k4 = jax.random.split(key, 4)
    fc1_w = jax.random.normal(k1, (hidden, 2 * inplanes), jnp.float32) * 0.1
    fc1_b = jax.random.normal(k2, (hidden,), jnp.float32) * 0.1
    fc2_w = jax.random.normal(k3, (2 * inplanes, hidden), jnp.float32) * 0.1
    fc2_b = jax.random.normal(k4, (2 * inplanes,), jnp.float32) * 0.1
    return dict(fc1_w=fc1_w, fc1_b=fc1_b, fc2_w=fc2_w, fc2_b=fc2_b)


def prepare_sefa_params(params, weight_dtype=jnp.float32):
    """One-time conversion of PyTorch-layout weights to kernel-ready tensors.

    Transposes / even-odd interleave-split / fc2 fusion happen once here, not
    per-call inside the jitted forward.  For very large C on v7x, pass
    weight_dtype=jnp.bfloat16 to halve resident-weight VMEM (f32 accumulation
    is kept inside the kernel).
    """
    fc1_w = jnp.asarray(params["fc1_w"])             # [hidden, 2C]
    fc1_b = jnp.asarray(params["fc1_b"])             # [hidden]
    fc2_w = jnp.asarray(params["fc2_w"])             # [2C, hidden]
    fc2_b = jnp.asarray(params["fc2_b"])             # [2C]
    hidden, two_c = fc1_w.shape
    C = two_c // 2

    w1t = fc1_w.T                                    # [2C, hidden]  (y = x @ W.T + b)
    w2t = fc2_w.T                                    # [hidden, 2C]
    # Fused fc2: even output columns (x1-gate logits) first, odd second.
    w2f = jnp.concatenate([w2t[:, 0::2], w2t[:, 1::2]], axis=1)        # [hidden, 2C]
    b2f = jnp.concatenate([fc2_b[0::2], fc2_b[1::2]]).reshape(1, two_c)

    cast = lambda a: a.astype(weight_dtype)
    return dict(
        w1a=cast(w1t[:C]),                           # [C, hidden] acts on pooled(x1)
        w1b=cast(w1t[C:]),                           # [C, hidden] acts on pooled(x2)
        b1=cast(fc1_b.reshape(1, hidden)),
        w2f=cast(w2f),
        b2f=cast(b2f),
    )


def _vmem_capacity_bytes():
    """Per-generation physical VMEM (128 MiB v5e/v6e, 64 MiB v7x)."""
    try:
        return int(pltpu.get_tpu_info().vmem_capacity_bytes)
    except Exception:
        return 64 << 20  # conservative fallback (v7x)


# ---------------------------------------------------------------------------
# Forward
# ---------------------------------------------------------------------------
@functools.partial(jax.jit, static_argnames=("force_two_pass", "hw_tile_override"))
def sefa_forward(x1, x2, kparams, force_two_pass=False, hw_tile_override=None):
    B, C, H, W = x1.shape
    hidden = kparams["w1a"].shape[1]
    HW = H * W
    inv_hw = 1.0 / HW

    itemsize = jnp.dtype(x1.dtype).itemsize
    per_row_bytes = C * HW * itemsize
    weight_bytes = sum(int(v.size) * jnp.dtype(v.dtype).itemsize for v in kparams.values())

    vmem_cap = _vmem_capacity_bytes()
    budget = vmem_cap - (8 << 20)          # headroom for Mosaic internal scratch
    headroom = 4 << 20
    target_block = 2 << 20                 # ~2 MiB stream blocks: near HBM roofline

    x1f = x1.reshape(B, C, HW)             # free reshape of contiguous dims; NO pad
    x2f = x2.reshape(B, C, HW)

    def single_pass_need(bt):
        # 3 streams (x1, x2, out), double-buffered, + 2x resident weights.
        return 3 * 2 * bt * per_row_bytes + 2 * weight_bytes + headroom

    # Batch folding: biggest Bt giving ~target-sized blocks, shrunk to divide B.
    bt = max(1, min(B, target_block // max(per_row_bytes, 1)))
    while B % bt:
        bt -= 1

    use_two_pass = bool(force_two_pass) or (single_pass_need(1) > budget)
    if not use_two_pass and single_pass_need(bt) > budget:
        bt = 1

    weight_specs = [
        pl.BlockSpec((C, hidden), lambda *_: (0, 0)),        # w1a
        pl.BlockSpec((C, hidden), lambda *_: (0, 0)),        # w1b
        pl.BlockSpec((1, hidden), lambda *_: (0, 0)),        # b1
        pl.BlockSpec((hidden, 2 * C), lambda *_: (0, 0)),    # w2f
        pl.BlockSpec((1, 2 * C), lambda *_: (0, 0)),         # b2f
    ]
    weight_args = (kparams["w1a"], kparams["w1b"], kparams["b1"],
                   kparams["w2f"], kparams["b2f"])

    if not use_two_pass:
        # -------- single fused pass, gridded over folded batches ----------
        x_spec = pl.BlockSpec((bt, C, HW), lambda i: (i, 0, 0))
        out = pl.pallas_call(
            functools.partial(sefa_fused_kernel, inv_hw=inv_hw, C=C),
            out_shape=jax.ShapeDtypeStruct((B, C, HW), x1.dtype),
            grid=(B // bt,),
            in_specs=[x_spec, x_spec] + weight_specs,
            out_specs=x_spec,
            compiler_params=pltpu.CompilerParams(
                dimension_semantics=("parallel",),
                vmem_limit_bytes=int(min(max(single_pass_need(bt), 32 << 20), budget)),
            ),
        )(x1f, x2f, *weight_args)
        return out.reshape(B, C, H, W)

    # ---------------- two-pass fallback (large C * HW) ---------------------
    if hw_tile_override is not None:
        hw_tile = int(hw_tile_override)
    else:
        hw_tile = max(128, ((target_block // max(C * itemsize, 1)) // 128) * 128)
    hw_tile = min(hw_tile, HW)
    if hw_tile < HW:
        hw_tile = max(128, (hw_tile // 128) * 128)   # lane-dense tiles unless full extent
    n_hw = pl.cdiv(HW, hw_tile)
    block_bytes = C * hw_tile * itemsize

    # Pass 1: pooled reduction + gate MLP + softmax -> gates (B, C, 1) in f32.
    gate_need = 2 * 2 * block_bytes + 2 * weight_bytes + 4 * C * 4 + headroom
    g1, g2 = pl.pallas_call(
        functools.partial(sefa_gate_kernel, inv_hw=inv_hw, hw=HW, hw_tile=hw_tile, C=C),
        out_shape=(jax.ShapeDtypeStruct((B, C, 1), jnp.float32),
                   jax.ShapeDtypeStruct((B, C, 1), jnp.float32)),
        grid=(B, n_hw),
        in_specs=[pl.BlockSpec((1, C, hw_tile), lambda b, t: (b, 0, t)),
                  pl.BlockSpec((1, C, hw_tile), lambda b, t: (b, 0, t))]
                 + weight_specs,
        out_specs=(pl.BlockSpec((1, C, 1), lambda b, t: (b, 0, 0)),
                   pl.BlockSpec((1, C, 1), lambda b, t: (b, 0, 0))),
        scratch_shapes=[pltpu.VMEM((1, C), jnp.float32),
                        pltpu.VMEM((1, C), jnp.float32)],
        compiler_params=pltpu.CompilerParams(
            dimension_semantics=("parallel", "arbitrary"),
            vmem_limit_bytes=int(min(max(gate_need, 32 << 20), budget)),
        ),
    )(x1f, x2f, *weight_args)

    # Pass 2: broadcasted combine, both grid axes parallel (keeps both v7x TCs
    # busy even when B is 1 or odd).
    combine_need = 3 * 2 * block_bytes + 4 * 2 * C * 4 + headroom
    xt_spec = pl.BlockSpec((1, C, hw_tile), lambda b, t: (b, 0, t))
    g_spec = pl.BlockSpec((1, C, 1), lambda b, t: (b, 0, 0))
    out = pl.pallas_call(
        sefa_combine_kernel,
        out_shape=jax.ShapeDtypeStruct((B, C, HW), x1.dtype),
        grid=(B, n_hw),
        in_specs=[xt_spec, xt_spec, g_spec, g_spec],
        out_specs=xt_spec,
        compiler_params=pltpu.CompilerParams(
            dimension_semantics=("parallel", "parallel"),
            vmem_limit_bytes=int(min(max(combine_need, 32 << 20), budget)),
        ),
    )(x1f, x2f, g1, g2)
    return out.reshape(B, C, H, W)


# ---------------------------------------------------------------------------
# Plain-JAX mirror of the PyTorch forward, for correctness checking.
# ---------------------------------------------------------------------------
def sefa_reference(x1, x2, params):
    B, C, H, W = x1.shape
    x = jnp.concatenate([x1, x2], axis=1)            # [B, 2C, H, W]
    x = x.mean(-1).mean(-1)                          # [B, 2C]
    x = jax.nn.relu(x @ params["fc1_w"].T + params["fc1_b"])
    x = x @ params["fc2_w"].T + params["fc2_b"]      # [B, 2C]
    x = jax.nn.softmax(x.reshape(B, C, 2), axis=2)
    w1 = x[:, :, 0].reshape(B, C, 1, 1)
    w2 = x[:, :, 1].reshape(B, C, 1, 1)
    return x1 * w1 + x2 * w2


if __name__ == "__main__":
    key = jax.random.PRNGKey(0)
    kp, kx1, kx2, ky1, ky2, kz1, kz2 = jax.random.split(key, 7)

    B, C = 2, 8                                      # inplanes=8, r=4 -> hidden=4
    params = init_sefa_params(kp, inplanes=C, r=4)
    kparams = prepare_sefa_params(params)

    # Case 1: HW a multiple of 128 (16x16) -> single fused pass, batch-folded grid.
    x1 = jax.random.normal(kx1, (B, C, 16, 16), jnp.float32)
    x2 = jax.random.normal(kx2, (B, C, 16, 16), jnp.float32)
    out = jax.block_until_ready(sefa_forward(x1, x2, kparams))
    ref = sefa_reference(x1, x2, params)
    assert out.shape == ref.shape
    assert jnp.allclose(out, ref, atol=1e-5, rtol=1e-5), "single-pass (256 lanes) mismatch"

    # Case 2: HW not a multiple of 128 (14x14) -> full-extent blocks, no wrapper
    # pad/slice, masked tail store handled inside the kernel.
    y1 = jax.random.normal(ky1, (B, C, 14, 14), jnp.float32)
    y2 = jax.random.normal(ky2, (B, C, 14, 14), jnp.float32)
    out2 = jax.block_until_ready(sefa_forward(y1, y2, kparams))
    ref2 = sefa_reference(y1, y2, params)
    assert jnp.allclose(out2, ref2, atol=1e-5, rtol=1e-5), "single-pass (ragged lanes) mismatch"

    # Case 3: force the two-pass (gate + combine) fallback with 128-lane HW
    # tiles and a ragged last tile (20*20 = 400 = 3*128 + 16) to exercise the
    # masked HW-tiled reduction and tiled combine.
    z1 = jax.random.normal(kz1, (B, C, 20, 20), jnp.float32)
    z2 = jax.random.normal(kz2, (B, C, 20, 20), jnp.float32)
    out3 = jax.block_until_ready(
        sefa_forward(z1, z2, kparams, force_two_pass=True, hw_tile_override=128))
    ref3 = sefa_reference(z1, z2, params)
    assert jnp.allclose(out3, ref3, atol=1e-5, rtol=1e-5), "two-pass mismatch"

    print("KERNEL_OK")
</pallas_src>

<mosaic_0001>
module attributes {stable_mosaic.version = 11 : i64} {
  func.func @sefa_fused_kernel(%arg0: i32, %arg1: memref<2x8x256xf32, #tpu.memory_space<vmem>>, %arg2: memref<2x8x256xf32, #tpu.memory_space<vmem>>, %arg3: memref<8x4xf32, #tpu.memory_space<vmem>>, %arg4: memref<8x4xf32, #tpu.memory_space<vmem>>, %arg5: memref<1x4xf32, #tpu.memory_space<vmem>>, %arg6: memref<4x16xf32, #tpu.memory_space<vmem>>, %arg7: memref<1x16xf32, #tpu.memory_space<vmem>>, %arg8: memref<2x8x256xf32, #tpu.memory_space<vmem>>) attributes {dimension_semantics = [#tpu.dimension_semantics<parallel>], iteration_bounds = array<i64: 1>, scalar_prefetch = 0 : i64, scratch_operands = 0 : i64, tpu.core_type = #tpu.core_type<tc>, window_params = [{transform_indices = @transform_0, window_bounds = array<i64: 2, 8, 256>}, {transform_indices = @transform_1, window_bounds = array<i64: 2, 8, 256>}, {pipeline_mode = #tpu.pipeline_mode<synchronous>, transform_indices = @transform_2, window_bounds = array<i64: 8, 4>}, {pipeline_mode = #tpu.pipeline_mode<synchronous>, transform_indices = @transform_3, window_bounds = array<i64: 8, 4>}, {pipeline_mode = #tpu.pipeline_mode<synchronous>, transform_indices = @transform_4, window_bounds = array<i64: 1, 4>}, {pipeline_mode = #tpu.pipeline_mode<synchronous>, transform_indices = @transform_5, window_bounds = array<i64: 4, 16>}, {pipeline_mode = #tpu.pipeline_mode<synchronous>, transform_indices = @transform_6, window_bounds = array<i64: 1, 16>}, {transform_indices = @transform_7, window_bounds = array<i64: 2, 8, 256>}]} {
    %c0 = arith.constant 0 : index
    %c0_0 = arith.constant 0 : index
    %c0_1 = arith.constant 0 : index
    %0 = vector.load %arg1[%c0, %c0_0, %c0_1] : memref<2x8x256xf32, #tpu.memory_space<vmem>>, vector<2x8x256xf32>
    %cst = arith.constant dense<0.000000e+00> : vector<2x8xf32>
    %1 = vector.multi_reduction <add>, %0, %cst [2] : vector<2x8x256xf32> to vector<2x8xf32>
    %cst_2 = arith.constant 3.906250e-03 : f32
    %2 = vector.broadcast %cst_2 : f32 to vector<2x8xf32>
    %3 = arith.mulf %1, %2 : vector<2x8xf32>
    %c0_3 = arith.constant 0 : index
    %c0_4 = arith.constant 0 : index
    %c0_5 = arith.constant 0 : index
    %4 = vector.load %arg2[%c0_3, %c0_4, %c0_5] : memref<2x8x256xf32, #tpu.memory_space<vmem>>, vector<2x8x256xf32>
    %cst_6 = arith.constant dense<0.000000e+00> : vector<2x8xf32>
    %5 = vector.multi_reduction <add>, %4, %cst_6 [2] : vector<2x8x256xf32> to vector<2x8xf32>
    %cst_7 = arith.constant 3.906250e-03 : f32
    %6 = vector.broadcast %cst_7 : f32 to vector<2x8xf32>
    %7 = arith.mulf %5, %6 : vector<2x8xf32>
    %c0_8 = arith.constant 0 : index
    %c0_9 = arith.constant 0 : index
    %8 = vector.load %arg3[%c0_8, %c0_9] : memref<8x4xf32, #tpu.memory_space<vmem>>, vector<8x4xf32>
    %cst_10 = arith.constant dense<0.000000e+00> : vector<2x4xf32>
    %9 = tpu.matmul %3, %8, %cst_10 {dimension_numbers = #tpu.dot_dimension_numbers<[1], [0], [0], [1], [0, 0, 1, 1], [], []>} : vector<2x8xf32>, vector<8x4xf32>, vector<2x4xf32> -> vector<2x4xf32>
    %c0_11 = arith.constant 0 : index
    %c0_12 = arith.constant 0 : index
    %10 = vector.load %arg4[%c0_11, %c0_12] : memref<8x4xf32, #tpu.memory_space<vmem>>, vector<8x4xf32>
    %cst_13 = arith.constant dense<0.000000e+00> : vector<2x4xf32>
    %11 = tpu.matmul %7, %10, %cst_13 {dimension_numbers = #tpu.dot_dimension_numbers<[1], [0], [0], [1], [0, 0, 1, 1], [], []>} : vector<2x8xf32>, vector<8x4xf32>, vector<2x4xf32> -> vector<2x4xf32>
    %12 = arith.addf %9, %11 : vector<2x4xf32>
    %c0_14 = arith.constant 0 : index
    %c0_15 = arith.constant 0 : index
    %13 = vector.load %arg5[%c0_14, %c0_15] : memref<1x4xf32, #tpu.memory_space<vmem>>, vector<1x4xf32>
    %14 = vector.broadcast %13 : vector<1x4xf32> to vector<2x4xf32>
    %15 = arith.addf %12, %14 : vector<2x4xf32>
    %cst_16 = arith.constant 0.000000e+00 : f32
    %16 = vector.broadcast %cst_16 : f32 to vector<2x4xf32>
    %17 = arith.maximumf %15, %16 : vector<2x4xf32>
    %c0_17 = arith.constant 0 : index
    %c0_18 = arith.constant 0 : index
    %18 = vector.load %arg6[%c0_17, %c0_18] : memref<4x16xf32, #tpu.memory_space<vmem>>, vector<4x16xf32>
    %cst_19 = arith.constant dense<0.000000e+00> : vector<2x16xf32>
    %19 = tpu.matmul %17, %18, %cst_19 {dimension_numbers = #tpu.dot_dimension_numbers<[1], [0], [0], [1], [0, 0, 1, 1], [], []>} : vector<2x4xf32>, vector<4x16xf32>, vector<2x16xf32> -> vector<2x16xf32>
    %c0_20 = arith.constant 0 : index
    %c0_21 = arith.constant 0 : index
    %20 = vector.load %arg7[%c0_20, %c0_21] : memref<1x16xf32, #tpu.memory_space<vmem>>, vector<1x16xf32>
    %21 = vector.broadcast %20 : vector<1x16xf32> to vector<2x16xf32>
    %22 = arith.addf %19, %21 : vector<2x16xf32>
    %23 = vector.extract_strided_slice %22 {offsets = [0, 0], sizes = [2, 8], strides = [1, 1]} : vector<2x16xf32> to vector<2x8xf32>
    %24 = vector.extract_strided_slice %22 {offsets = [0, 8], sizes = [2, 8], strides = [1, 1]} : vector<2x16xf32> to vector<2x8xf32>
    %25 = arith.maximumf %23, %24 : vector<2x8xf32>
    %26 = arith.subf %23, %25 : vector<2x8xf32>
    %27 = math.exp %26 : vector<2x8xf32>
    %28 = arith.subf %24, %25 : vector<2x8xf32>
    %29 = math.exp %28 : vector<2x8xf32>
    %30 = arith.addf %27, %29 : vector<2x8xf32>
    %cst_22 = arith.constant 1.000000e+00 : f32
    %31 = vector.broadcast %cst_22 : f32 to vector<2x8xf32>
    %32 = arith.divf %31, %30 : vector<2x8xf32>
    %33 = arith.mulf %27, %32 : vector<2x8xf32>
    %34 = vector.shape_cast %33 : vector<2x8xf32> to vector<2x8x1xf32>
    %35 = arith.mulf %29, %32 : vector<2x8xf32>
    %36 = vector.shape_cast %35 : vector<2x8xf32> to vector<2x8x1xf32>
    %c0_23 = arith.constant 0 : index
    %c0_24 = arith.constant 0 : index
    %c0_25 = arith.constant 0 : index
    %37 = vector.load %arg1[%c0_23, %c0_24, %c0_25] : memref<2x8x256xf32, #tpu.memory_space<vmem>>, vector<2x8x256xf32>
    %38 = vector.broadcast %34 : vector<2x8x1xf32> to vector<2x8x256xf32>
    %39 = arith.mulf %37, %38 : vector<2x8x256xf32>
    %c0_26 = arith.constant 0 : index
    %c0_27 = arith.constant 0 : index
    %c0_28 = arith.constant 0 : index
    %40 = vector.load %arg2[%c0_26, %c0_27, %c0_28] : memref<2x8x256xf32, #tpu.memory_space<vmem>>, vector<2x8x256xf32>
    %41 = vector.broadcast %36 : vector<2x8x1xf32> to vector<2x8x256xf32>
    %42 = arith.mulf %40, %41 : vector<2x8x256xf32>
    %43 = arith.addf %39, %42 : vector<2x8x256xf32>
    %c0_29 = arith.constant 0 : index
    %c0_30 = arith.constant 0 : index
    %c0_31 = arith.constant 0 : index
    %44 = vector.load %arg8[%c0_29, %c0_30, %c0_31] : memref<2x8x256xf32, #tpu.memory_space<vmem>>, vector<2x8x256xf32>
    tpu.vector_store %arg8[%c0_29, %c0_30, %c0_31], %43 {strides = array<i32>} : memref<2x8x256xf32, #tpu.memory_space<vmem>>, vector<2x8x256xf32>,
    return
  }
  func.func @transform_0(%arg0: i32) -> (i32, i32, i32) {
    %c0_i32 = arith.constant 0 : i32
    %c0_i32_0 = arith.constant 0 : i32
    %c0_i32_1 = arith.constant 0 : i32
    return %arg0, %c0_i32, %c0_i32_0 : i32, i32, i32
  }
  func.func @transform_1(%arg0: i32) -> (i32, i32, i32) {
    %c0_i32 = arith.constant 0 : i32
    %c0_i32_0 = arith.constant 0 : i32
    %c0_i32_1 = arith.constant 0 : i32
    return %arg0, %c0_i32, %c0_i32_0 : i32, i32, i32
  }
  func.func @transform_2(%arg0: i32) -> (i32, i32) {
    %c0_i32 = arith.constant 0 : i32
    %c0_i32_0 = arith.constant 0 : i32
    %c0_i32_1 = arith.constant 0 : i32
    return %c0_i32, %c0_i32_0 : i32, i32
  }
  func.func @transform_3(%arg0: i32) -> (i32, i32) {
    %c0_i32 = arith.constant 0 : i32
    %c0_i32_0 = arith.constant 0 : i32
    %c0_i32_1 = arith.constant 0 : i32
    return %c0_i32, %c0_i32_0 : i32, i32
  }
  func.func @transform_4(%arg0: i32) -> (i32, i32) {
    %c0_i32 = arith.constant 0 : i32
    %c0_i32_0 = arith.constant 0 : i32
    %c0_i32_1 = arith.constant 0 : i32
    return %c0_i32, %c0_i32_0 : i32, i32
  }
  func.func @transform_5(%arg0: i32) -> (i32, i32) {
    %c0_i32 = arith.constant 0 : i32
    %c0_i32_0 = arith.constant 0 : i32
    %c0_i32_1 = arith.constant 0 : i32
    return %c0_i32, %c0_i32_0 : i32, i32
  }
  func.func @transform_6(%arg0: i32) -> (i32, i32) {
    %c0_i32 = arith.constant 0 : i32
    %c0_i32_0 = arith.constant 0 : i32
    %c0_i32_1 = arith.constant 0 : i32
    return %c0_i32, %c0_i32_0 : i32, i32
  }
  func.func @transform_7(%arg0: i32) -> (i32, i32, i32) {
    %c0_i32 = arith.constant 0 : i32
    %c0_i32_0 = arith.constant 0 : i32
    %c0_i32_1 = arith.constant 0 : i32
    return %arg0, %c0_i32, %c0_i32_0 : i32, i32, i32
  }
}

</mosaic_0001>

<llo_original>
// kernel: sefa_forward.1
$region0: #{sefa_forward.1}
  #allocation0 [shape = 'u32[]', space=smem, size = 0x4, offset = 0x4, fixed_abs, tag = 'smem constant byte address 0x4 - core index']
  #allocation1 [shape = 'u32[144,128]{1,0:T(1,128)}', space=vmem, size = 0x12000, scoped, tag = 'internal scratch']
  %s0 = inlined_call_operand.vmem [shape: f32[2,8,256], index: 0, kind: input, shape index: {}]
  %s1 = inlined_call_operand.vmem [shape: f32[2,8,256], index: 1, kind: input, shape index: {}]
  %s2 = inlined_call_operand.vmem [shape: f32[8,4], index: 2, kind: input, shape index: {}]
  %s3 = inlined_call_operand.vmem [shape: f32[8,4], index: 3, kind: input, shape index: {}]
  %s4 = inlined_call_operand.vmem [shape: f32[1,4], index: 4, kind: input, shape index: {}]
  %s5 = inlined_call_operand.vmem [shape: f32[4,16], index: 5, kind: input, shape index: {}]
  %s6 = inlined_call_operand.vmem [shape: f32[1,16], index: 6, kind: input, shape index: {}]
  %s7 = inlined_call_operand.vmem [shape: f32[2,8,256], index: 7, kind: output, shape index: {}]
  %s8 = sld [smem:[#allocation0]]
  $region38: #{sefa_forward.1} parent=0
    _
  %s10 = ssub.s32 1, %s8
  %s11 = scalar_select 0, %s10, %s8
  // Predicated region
  $region2: #{sefa_forward.1} parent=0 // pred_check
    _
  $region3: #{sefa_forward.1} parent=0 // pred_check_branch
    %13 = sbr.rel (0) target = $region5
  $region4: #{sefa_forward.1} parent=0 // pred_region
    _
  $region5: #{sefa_forward.1} parent=0 // pred_fallthru
    _
  // Predicated region
  $region6: #{sefa_forward.1} parent=0 // pred_check
    _
  $region7: #{sefa_forward.1} parent=0 // pred_check_branch
    %15 = sbr.rel (0) target = $region9
  $region8: #{sefa_forward.1} parent=0 // pred_region
    _
  $region9: #{sefa_forward.1} parent=0 // pred_fallthru
    _
  // Predicated region
  $region10: #{sefa_forward.1} parent=0 // pred_check
    _
  $region11: #{sefa_forward.1} parent=0 // pred_check_branch
    %17 = sbr.rel (0) target = $region13
  $region12: #{sefa_forward.1} parent=0 // pred_region
    _
  $region13: #{sefa_forward.1} parent=0 // pred_fallthru
    _
  // Predicated region
  $region14: #{sefa_forward.1} parent=0 // pred_check
    _
  $region15: #{sefa_forward.1} parent=0 // pred_check_branch
    %19 = sbr.rel (0) target = $region17
  $region16: #{sefa_forward.1} parent=0 // pred_region
    _
  $region17: #{sefa_forward.1} parent=0 // pred_fallthru
    _
  // Predicated region
  $region18: #{sefa_forward.1} parent=0 // pred_check
    _
  $region19: #{sefa_forward.1} parent=0 // pred_check_branch
    %21 = sbr.rel (0) target = $region21
  $region20: #{sefa_forward.1} parent=0 // pred_region
    _
  $region21: #{sefa_forward.1} parent=0 // pred_fallthru
    _
  // Predicated region
  $region22: #{sefa_forward.1} parent=0 // pred_check
    _
  $region23: #{sefa_forward.1} parent=0 // pred_check_branch
    %23 = sbr.rel (0) target = $region25
  $region24: #{sefa_forward.1} parent=0 // pred_region
    _
  $region25: #{sefa_forward.1} parent=0 // pred_fallthru
    _
  // Predicated region
  $region26: #{sefa_forward.1} parent=0 // pred_check
    _
  $region27: #{sefa_forward.1} parent=0 // pred_check_branch
    %25 = sbr.rel (0) target = $region29
  $region28: #{sefa_forward.1} parent=0 // pred_region
    _
  $region29: #{sefa_forward.1} parent=0 // pred_fallthru
    _
  %v26 = vld [vmem:[%s0] sm:$0xff]
  %v27 = vld [vmem:[%s0 + $0x8] sm:$0xff]
  %v28 = vld [vmem:[%s0 + $0x10] sm:$0xff]
  %v29 = vld [vmem:[%s0 + $0x18] sm:$0xff]
  %v30 = vadd.f32 %v26, %v27
  %31 = vadd.xlane.f32.xlu0 %v30
  %v32 = vpop.xlane.xlu0 %31
  %v33 = vadd.f32 %v28, %v29
  %34 = vadd.xlane.f32.xlu0 %v33
  %v35 = vpop.xlane.xlu0 %34
  %v36 = vmul.f32 %v32, 0.00390625
  %v37 = vmul.f32 %v35, 0.00390625
  %v38 = vld [vmem:[%s1] sm:$0xff]
  %v39 = vld [vmem:[%s1 + $0x8] sm:$0xff]
  %v40 = vld [vmem:[%s1 + $0x10] sm:$0xff]
  %v41 = vld [vmem:[%s1 + $0x18] sm:$0xff]
  %v42 = vadd.f32 %v38, %v39
  %43 = vadd.xlane.f32.xlu0 %v42
  %v44 = vpop.xlane.xlu0 %43
  %v45 = vadd.f32 %v40, %v41
  %46 = vadd.xlane.f32.xlu0 %v45
  %v47 = vpop.xlane.xlu0 %46
  %v48 = vmul.f32 %v44, 0.00390625
  %v49 = vmul.f32 %v47, 0.00390625
  %v50 = vld [vmem:[%s2] sm:$0xff]
  %v51 = vld [vmem:[%s3] sm:$0xff]
  %v54 = vlaneseq
  %v55 = vand.u32 %v54, 127
  %v56 = vlaneseq
  %v57 = vshrl.u32 %v56, 7
  %v58 = vsub.s32 %v55, %v57
  %v59 = vrot.slane %v48, %v58
  %v60 = vlaneseq
  %v61 = vshrl.u32 %v60, 7
  %v62 = vsub.s32 %v55, %v61
  %v63 = vrot.slane %v49, %v62
  %vm64 = vcmask 1041409
  %v65 = vsel %vm64, %v63, %v59
  %vm66 = vcmask 64512
  %v67 = vsel %vm66, %v65, 0
  %69 = vmatprep.subr.mxu0 0.0
  %70 = vmatpush1.msra.mxu0 %v51
  %71 = vmatprep.subr.mxu0 0.0
  %72 = vmatpush1.msra.mxu0 0.0
  %73 = vmatprep.subr.mxu0 0.0
  %74 = vmatpush1.msra.mxu0 0.0
  %75 = vmatprep.subr.mxu0 0.0
  %76 = vmatpush1.msra.mxu0 0.0
  %77 = vmatprep.subr.mxu0 0.0
  %78 = vmatpush1.msra.mxu0 0.0
  %79 = vmatprep.subr.mxu0 0.0
  %80 = vmatpush1.msra.mxu0 0.0
  %81 = vmatprep.subr.mxu0 0.0
  %82 = vmatpush1.msra.mxu0 0.0
  %83 = vmatprep.subr.mxu0 0.0
  %84 = vmatpush1.msra.mxu0 0.0
  %85 = vmatprep.subr.mxu0 0.0
  %86 = vmatpush1.msra.mxu0 0.0
  %87 = vmatprep.subr.mxu0 0.0
  %88 = vmatpush1.msra.mxu0 0.0
  %89 = vmatprep.subr.mxu0 0.0
  %90 = vmatpush1.msra.mxu0 0.0
  %91 = vmatprep.subr.mxu0 0.0
  %92 = vmatpush1.msra.mxu0 0.0
  %93 = vmatprep.subr.mxu0 0.0
  %94 = vmatpush1.msra.mxu0 0.0
  %95 = vmatprep.subr.mxu0 0.0
  %96 = vmatpush1.msra.mxu0 0.0
  %97 = vmatprep.subr.mxu0 0.0
  %98 = vmatpush1.msra.mxu0 0.0
  %99 = vmatprep.subr.mxu0 0.0
  %100 = vmatpush1.msra.mxu0 0.0
  %101 = vmatprep.subr.mxu0 0.0
  %102 = vmatpush1.msra.mxu0 0.0
  %103 = vmatprep.subr.mxu0 0.0
  %104 = vmatpush1.msra.mxu0 0.0
  %105 = vmatprep.subr.mxu0 0.0
  %106 = vmatpush1.msra.mxu0 0.0
  %107 = vmatprep.subr.mxu0 0.0
  %108 = vmatpush1.msra.mxu0 0.0
  %109 = vmatprep.subr.mxu0 0.0
  %110 = vmatpush1.msra.mxu0 0.0
  %111 = vmatprep.subr.mxu0 0.0
  %112 = vmatpush1.msra.mxu0 0.0
  %113 = vmatprep.subr.mxu0 0.0
  %114 = vmatpush1.msra.mxu0 0.0
  %115 = vmatprep.subr.mxu0 0.0
  %116 = vmatpush1.msra.mxu0 0.0
  %117 = vmatprep.subr.mxu0 0.0
  %118 = vmatpush1.msra.mxu0 0.0
  %119 = vmatprep.subr.mxu0 0.0
  %120 = vmatpush1.msra.mxu0 0.0
  %121 = vmatprep.subr.mxu0 0.0
  %122 = vmatpush1.msra.mxu0 0.0
  %123 = vmatprep.subr.mxu0 0.0
  %124 = vmatpush1.msra.mxu0 0.0
  %125 = vmatprep.subr.mxu0 0.0
  %126 = vmatpush1.msra.mxu0 0.0
  %127 = vmatprep.subr.mxu0 0.0
  %128 = vmatpush1.msra.mxu0 0.0
  %129 = vmatprep.subr.mxu0 0.0
  %130 = vmatpush1.msra.mxu0 0.0
  %131 = vmatprep.subr.mxu0 0.0
  %132 = vmatpush1.msra.mxu0 0.0
  %133 = vmatprep.mubr.f32.mxu0 0.0
  %134 = vmatmul.mubr.f32.gmra.mrb[0].mxu0 %v67
  %v135 = vpop.f32.mrb[0].mxu0
  %v136 = vadd.f32 0.0, %v135
  %v137 = vpop.f32.mrb[0].mxu0
  %138 = vdwg.mxu0
  %v141 = vlaneseq
  %v142 = vshrl.u32 %v141, 7
  %v143 = vsub.s32 %v55, %v142
  %v144 = vrot.slane %v36, %v143
  %v145 = vlaneseq
  %v146 = vshrl.u32 %v145, 7
  %v147 = vsub.s32 %v55, %v146
  %v148 = vrot.slane %v37, %v147
  %v149 = vsel %vm64, %v148, %v144
  %v150 = vsel %vm66, %v149, 0
  %152 = vmatprep.subr.mxu0 0.0
  %153 = vmatpush1.msra.mxu0 %v50
  %154 = vmatprep.subr.mxu0 0.0
  %155 = vmatpush1.msra.mxu0 0.0
  %156 = vmatprep.subr.mxu0 0.0
  %157 = vmatpush1.msra.mxu0 0.0
  %158 = vmatprep.subr.mxu0 0.0
  %159 = vmatpush1.msra.mxu0 0.0
  %160 = vmatprep.subr.mxu0 0.0
  %161 = vmatpush1.msra.mxu0 0.0
  %162 = vmatprep.subr.mxu0 0.0
  %163 = vmatpush1.msra.mxu0 0.0
  %164 = vmatprep.subr.mxu0 0.0
  %165 = vmatpush1.msra.mxu0 0.0
  %166 = vmatprep.subr.mxu0 0.0
  %167 = vmatpush1.msra.mxu0 0.0
  %168 = vmatprep.subr.mxu0 0.0
  %169 = vmatpush1.msra.mxu0 0.0
  %170 = vmatprep.subr.mxu0 0.0
  %171 = vmatpush1.msra.mxu0 0.0
  %172 = vmatprep.subr.mxu0 0.0
  %173 = vmatpush1.msra.mxu0 0.0
  %174 = vmatprep.subr.mxu0 0.0
  %175 = vmatpush1.msra.mxu0 0.0
  %176 = vmatprep.subr.mxu0 0.0
  %177 = vmatpush1.msra.mxu0 0.0
  %178 = vmatprep.subr.mxu0 0.0
  %179 = vmatpush1.msra.mxu0 0.0
  %180 = vmatprep.subr.mxu0 0.0
  %181 = vmatpush1.msra.mxu0 0.0
  %182 = vmatprep.subr.mxu0 0.0
  %183 = vmatpush1.msra.mxu0 0.0
  %184 = vmatprep.subr.mxu0 0.0
  %185 = vmatpush1.msra.mxu0 0.0
  %186 = vmatprep.subr.mxu0 0.0
  %187 = vmatpush1.msra.mxu0 0.0
  %188 = vmatprep.subr.mxu0 0.0
  %189 = vmatpush1.msra.mxu0 0.0
  %190 = vmatprep.subr.mxu0 0.0
  %191 = vmatpush1.msra.mxu0 0.0
  %192 = vmatprep.subr.mxu0 0.0
  %193 = vmatpush1.msra.mxu0 0.0
  %194 = vmatprep.subr.mxu0 0.0
  %195 = vmatpush1.msra.mxu0 0.0
  %196 = vmatprep.subr.mxu0 0.0
  %197 = vmatpush1.msra.mxu0 0.0
  %198 = vmatprep.subr.mxu0 0.0
  %199 = vmatpush1.msra.mxu0 0.0
  %200 = vmatprep.subr.mxu0 0.0
  %201 = vmatpush1.msra.mxu0 0.0
  %202 = vmatprep.subr.mxu0 0.0
  %203 = vmatpush1.msra.mxu0 0.0
  %204 = vmatprep.subr.mxu0 0.0
  %205 = vmatpush1.msra.mxu0 0.0
  %206 = vmatprep.subr.mxu0 0.0
  %207 = vmatpush1.msra.mxu0 0.0
  %208 = vmatprep.subr.mxu0 0.0
  %209 = vmatpush1.msra.mxu0 0.0
  %210 = vmatprep.subr.mxu0 0.0
  %211 = vmatpush1.msra.mxu0 0.0
  %212 = vmatprep.subr.mxu0 0.0
  %213 = vmatpush1.msra.mxu0 0.0
  %214 = vmatprep.subr.mxu0 0.0
  %215 = vmatpush1.msra.mxu0 0.0
  %216 = vmatprep.mubr.f32.mxu0 0.0
  %217 = vmatmul.mubr.f32.gmra.mrb[0].mxu0 %v150
  %v218 = vpop.f32.mrb[0].mxu0
  %v219 = vadd.f32 %v136, %v218
  %v220 = vpop.f32.mrb[0].mxu0
  %221 = vdwg.mxu0
  %v222 = vld [vmem:[%s4] sm:$0x1]
  %v224 = vlaneseq
  %v225 = vshrl.u32 %v224, 7
  %v226 = vsub.s32 0, %v225
  %v227 = vrot.slane %v222, %v226
  %v229 = vadd.f32 %v219, %v227
  %v230 = vmax.f32 %v229, 0.0
  %v231 = vld [vmem:[%s5] sm:$0xf]
  %v232 = vld [vmem:[%s6] sm:$0x1]
  %v234 = vlaneseq
  %v235 = vshrl.u32 %v234, 7
  %v236 = vsub.s32 0, %v235
  %v237 = vrot.slane %v232, %v236
  %vm239 = vcmask 31744
  %v241 = vsel %vm239, %v230, 0
  %vm243 = vcmask 1043456
  %v245 = vsel %vm243, %v231, 0
  %247 = vmatprep.subr.mxu0 0.0
  %248 = vmatpush1.msra.mxu0 %v245
  %249 = vmatprep.subr.mxu0 0.0
  %250 = vmatpush1.msra.mxu0 0.0
  %251 = vmatprep.subr.mxu0 0.0
  %252 = vmatpush1.msra.mxu0 0.0
  %253 = vmatprep.subr.mxu0 0.0
  %254 = vmatpush1.msra.mxu0 0.0
  %255 = vmatprep.subr.mxu0 0.0
  %256 = vmatpush1.msra.mxu0 0.0
  %257 = vmatprep.subr.mxu0 0.0
  %258 = vmatpush1.msra.mxu0 0.0
  %259 = vmatprep.subr.mxu0 0.0
  %260 = vmatpush1.msra.mxu0 0.0
  %261 = vmatprep.subr.mxu0 0.0
  %262 = vmatpush1.msra.mxu0 0.0
  %263 = vmatprep.subr.mxu0 0.0
  %264 = vmatpush1.msra.mxu0 0.0
  %265 = vmatprep.subr.mxu0 0.0
  %266 = vmatpush1.msra.mxu0 0.0
  %267 = vmatprep.subr.mxu0 0.0
  %268 = vmatpush1.msra.mxu0 0.0
  %269 = vmatprep.subr.mxu0 0.0
  %270 = vmatpush1.msra.mxu0 0.0
  %271 = vmatprep.subr.mxu0 0.0
  %272 = vmatpush1.msra.mxu0 0.0
  %273 = vmatprep.subr.mxu0 0.0
  %274 = vmatpush1.msra.mxu0 0.0
  %275 = vmatprep.subr.mxu0 0.0
  %276 = vmatpush1.msra.mxu0 0.0
  %277 = vmatprep.subr.mxu0 0.0
  %278 = vmatpush1.msra.mxu0 0.0
  %279 = vmatprep.subr.mxu0 0.0
  %280 = vmatpush1.msra.mxu0 0.0
  %281 = vmatprep.subr.mxu0 0.0
  %282 = vmatpush1.msra.mxu0 0.0
  %283 = vmatprep.subr.mxu0 0.0
  %284 = vmatpush1.msra.mxu0 0.0
  %285 = vmatprep.subr.mxu0 0.0
  %286 = vmatpush1.msra.mxu0 0.0
  %287 = vmatprep.subr.mxu0 0.0
  %288 = vmatpush1.msra.mxu0 0.0
  %289 = vmatprep.subr.mxu0 0.0
  %290 = vmatpush1.msra.mxu0 0.0
  %291 = vmatprep.subr.mxu0 0.0
  %292 = vmatpush1.msra.mxu0 0.0
  %293 = vmatprep.subr.mxu0 0.0
  %294 = vmatpush1.msra.mxu0 0.0
  %295 = vmatprep.subr.mxu0 0.0
  %296 = vmatpush1.msra.mxu0 0.0
  %297 = vmatprep.subr.mxu0 0.0
  %298 = vmatpush1.msra.mxu0 0.0
  %299 = vmatprep.subr.mxu0 0.0
  %300 = vmatpush1.msra.mxu0 0.0
  %301 = vmatprep.subr.mxu0 0.0
  %302 = vmatpush1.msra.mxu0 0.0
  %303 = vmatprep.subr.mxu0 0.0
  %304 = vmatpush1.msra.mxu0 0.0
  %305 = vmatprep.subr.mxu0 0.0
  %306 = vmatpush1.msra.mxu0 0.0
  %307 = vmatprep.subr.mxu0 0.0
  %308 = vmatpush1.msra.mxu0 0.0
  %309 = vmatprep.subr.mxu0 0.0
  %310 = vmatpush1.msra.mxu0 0.0
  %311 = vmatprep.mubr.f32.mxu0 0.0
  %312 = vmatmul.mubr.f32.gmra.mrb[0].mxu0 %v241
  %v313 = vpop.f32.mrb[0].mxu0
  %v314 = vadd.f32 %v237, %v313
  %v315 = vpop.f32.mrb[0].mxu0
  %316 = vdwg.mxu0
  %318 = vrot.lane.b32.xlu0 %v314, 120
  %v319 = vpop.permute.xlu0 %318
  %v321 = vmax.f32 %v314, %v319
  %v322 = vsub.f32 %v314, %v321
  %v323 = vmul.f32 %v322, 1.442695
  %v324 = vpow.pop %v323
  %326 = vrot.lane.b32.xlu0 %v321, 8
  %v327 = vpop.permute.xlu0 %326
  %v329 = vsub.f32 %v314, %v327
  %v330 = vmul.f32 %v329, 1.442695
  %v331 = vpow.pop %v330
  %333 = vrot.lane.b32.xlu0 %v331, 120
  %v334 = vpop.permute.xlu0 %333
  %v336 = vadd.f32 %v324, %v334
  %v337 = vrcp.pop %v336
  %v338 = vmul.f32 1.0, %v337
  %v339 = vmul.f32 %v324, %v338
  %v340 = vlaneseq
  %v341 = vshrl.u32 %v340, 7
  %v342 = vsub.s32 0, %v341
  %v343 = vrot.slane %v339, %v342
  %345 = vbcast.lane.b32.xlu0 %v343, 256
  %v346 = vpop.permute.xlu0 %345
  %v347 = vlaneseq
  %v348 = vshrl.u32 %v347, 7
  %v349 = vsub.s32 1, %v348
  %v350 = vrot.slane %v339, %v349
  %352 = vbcast.lane.b32.xlu0 %v350, 256
  %v353 = vpop.permute.xlu0 %352
  %355 = vrot.lane.b32.xlu0 %v338, 8
  %v356 = vpop.permute.xlu0 %355
  %v358 = vmul.f32 %v331, %v356
  %v359 = vlaneseq
  %v360 = vshrl.u32 %v359, 7
  %v361 = vsub.s32 0, %v360
  %v362 = vrot.slane %v358, %v361
  %s364 = sor.u32 256, 8
  %365 = vbcast.lane.b32.xlu0 %v362, %s364
  %v366 = vpop.permute.xlu0 %365
  %v367 = vlaneseq
  %v368 = vshrl.u32 %v367, 7
  %v369 = vsub.s32 1, %v368
  %v370 = vrot.slane %v358, %v369
  %s372 = sor.u32 256, 8
  %373 = vbcast.lane.b32.xlu0 %v370, %s372
  %v374 = vpop.permute.xlu0 %373
  %v375 = vmul.f32 %v26, %v346
  %v376 = vmul.f32 %v27, %v346
  %v377 = vmul.f32 %v28, %v353
  %v378 = vmul.f32 %v29, %v353
  %v379 = vmul.f32 %v38, %v366
  %v380 = vmul.f32 %v39, %v366
  %v381 = vmul.f32 %v40, %v374
  %v382 = vmul.f32 %v41, %v374
  %v383 = vadd.f32 %v375, %v379
  %v384 = vadd.f32 %v376, %v380
  %v385 = vadd.f32 %v377, %v381
  %v386 = vadd.f32 %v378, %v382
  %387 = vst [vmem:[%s7] sm:$0xff] %v383
  %388 = vst [vmem:[%s7 + $0x8] sm:$0xff] %v384
  %389 = vst [vmem:[%s7 + $0x10] sm:$0xff] %v385
  %390 = vst [vmem:[%s7 + $0x18] sm:$0xff] %v386
  // Predicated region
  $region30: #{sefa_forward.1} parent=0 // pred_check
    _
  $region31: #{sefa_forward.1} parent=0 // pred_check_branch
    %392 = sbr.rel (0) target = $region33
  $region32: #{sefa_forward.1} parent=0 // pred_region
    _
  $region33: #{sefa_forward.1} parent=0 // pred_fallthru
    _
  // Predicated region
  $region34: #{sefa_forward.1} parent=0 // pred_check
    _
  $region35: #{sefa_forward.1} parent=0 // pred_check_branch
    %394 = sbr.rel (0) target = $region37
  $region36: #{sefa_forward.1} parent=0 // pred_region
    _
  $region37: #{sefa_forward.1} parent=0 // pred_fallthru
    _

</llo_original>
